<compile_context>
chip_gen: v7x
topology: tpu7x:2x2x1
jax: 0.10.0
libtpu: 0.0.40
codegen_flags: <defaults>
</compile_context>

<pallas_src>
import jax
import jax.numpy as jnp
from jax.experimental import pallas as pl
from jax.experimental.pallas import tpu as pltpu


def _vmem_capacity_bytes():
    """Generation-aware VMEM capacity with a conservative fallback."""
    try:
        cap = getattr(pltpu.get_tpu_info(), "vmem_capacity_bytes", None)
        if cap:
            return int(cap)
    except Exception:
        pass
    return 64 << 20  # conservative (v7x-class) fallback


def _plan_tiles(P, C, Co, Cm, x_itemsize, max_tp=None):
    """Pick the spatial tile tp and the VMEM limit, scaled to the chip."""
    cap = _vmem_capacity_bytes()
    tile_budget = max(2 << 20, (cap * 3) // 8)   # ~24 MiB on v7x, ~48 MiB on v5e/v6e
    vmem_limit = min((cap * 5) // 8, 80 << 20)    # ~40 MiB on v7x, 80 MiB on v5e/v6e

    # Approximate per-lane working-set bytes: double-buffered x block + bf16
    # tile copy + f32 accumulators + live f32 intermediates (y/l/h/z/wgt/...).
    per_lane = (2 * C * x_itemsize) + (2 * C) + (2 * Co * 4) + (8 * (Co + Cm) * 4)
    budget_tp = max(128, (tile_budget // per_lane) // 128 * 128)
    budget_tp = min(budget_tp, 256 * 1024)        # ~64K-256K lanes is plenty
    if max_tp is not None:
        budget_tp = min(budget_tp, max(128, (max_tp // 128) * 128))

    if P <= budget_tp:
        tp = P            # single tile: block dim == full array dim is always legal
    else:
        tp = budget_tp    # multiple of 128; ragged tail handled by in-kernel masking
    n_tiles = -(-P // tp)
    return tp, n_tiles, vmem_limit


def mil_custom_pooling(x_nchw, bn_scale, bn_shift, wc, bc, w1, b1, w2, b2,
                       *, max_tp=None):
    """MIL custom pooling forward.

    x_nchw:             (N, C, H, W), f32 or bf16.
    bn_scale, bn_shift: (C, 1) folded inference-form BatchNorm parameters.
    wc, bc:             classifier 1x1 conv       (Co, C) / (Co, 1).
    w1, b1:             weight_generator conv1    (Cm, C) / (Cm, 1).
    w2, b2:             weight_generator conv2    (Co, Cm) / (Co, 1).
    Returns (N, Co) f32 MIL-pooled logits.
    """
    N, C, H, W = x_nchw.shape
    P = H * W
    Co = wc.shape[0]
    Cm = w1.shape[0]

    # ---- Host-side (tiny) weight preparation --------------------------------
    # Fold BatchNorm (inference form) into the first weight-generator conv.
    scale = bn_scale.reshape(C).astype(jnp.float32)
    shift = bn_shift.reshape(C, 1).astype(jnp.float32)
    w1f = w1.astype(jnp.float32) * scale[None, :]                     # (Cm, C)
    b1f = b1.astype(jnp.float32) + w1.astype(jnp.float32) @ shift     # (Cm, 1)

    # Stack classifier + folded conv1 so the kernel issues ONE matmul vs x.
    w_stack = jnp.concatenate([wc.astype(jnp.float32), w1f], axis=0).astype(jnp.bfloat16)
    b_stack = jnp.concatenate([bc.astype(jnp.float32), b1f], axis=0)  # (Co+Cm, 1) f32
    w2f = w2.astype(jnp.float32)
    b2f = b2.astype(jnp.float32)

    # x stays in its incoming dtype: merging trailing dims is a free reshape and
    # the bf16 cast happens inside the kernel in VMEM (no extra HBM pass).
    x_ncp = x_nchw.reshape(N, C, P)
    x_item = jnp.dtype(x_ncp.dtype).itemsize

    tp, n_tiles, vmem_limit = _plan_tiles(P, C, Co, Cm, x_item, max_tp=max_tp)

    # Spatial split for megacore (v7x = 2 TCs/chip): only needed when the batch
    # axis alone cannot balance the cores; harmless elsewhere.
    NS = 2 if (N % 2 == 1 and n_tiles >= 2) else 1
    n_p = -(-n_tiles // NS)
    needs_clamp = NS * n_p > n_tiles          # overrun tiles exist (fully masked)
    needs_mask = NS * n_p * tp != P           # any padded / overrun lanes

    if needs_clamp:
        x_index_map = lambda n, s, p: (n, 0, jnp.minimum(s * n_p + p, n_tiles - 1))
    else:
        x_index_map = lambda n, s, p: (n, 0, s * n_p + p)

    def kernel(x_ref, ws_ref, bs_ref, w2_ref, b2_ref,
               num_ref, den_ref, num_acc, den_acc):
        p = pl.program_id(2)

        @pl.when(p == 0)
        def _():
            num_acc[...] = jnp.zeros_like(num_acc)
            den_acc[...] = jnp.zeros_like(den_acc)

        # x tile -> bf16 in VMEM (no-op if the producer already hands us bf16).
        xb = x_ref[...].astype(jnp.bfloat16)                              # (C, tp)

        # One MXU matmul for classifier + (BN-folded) weight-generator conv1.
        y = jnp.dot(ws_ref[...], xb,
                    preferred_element_type=jnp.float32) + bs_ref[...]     # (Co+Cm, tp)

        l = y[:Co, :]                                                     # (Co, tp)
        h = jnp.maximum(y[Co:, :], 0.0)                                   # (Cm, tp)

        # Second (tiny, K = Cm) projection.
        if Cm <= 8:
            # Cm broadcast-FMAs on the VPU: avoids a tiny f32 MXU matmul on the
            # per-step critical path.
            z = b2_ref[...]                                               # (Co, 1)
            for m in range(Cm):
                z = z + w2_ref[:, m:m + 1] * h[m:m + 1, :]                # -> (Co, tp)
        else:
            z = jnp.dot(w2_ref[...].astype(jnp.bfloat16), h.astype(jnp.bfloat16),
                        preferred_element_type=jnp.float32) + b2_ref[...]

        wgt = jax.nn.sigmoid(z)                                           # (Co, tp)
        contrib = wgt * l                                                 # (Co, tp)

        if needs_mask:
            # Zero padded / out-of-range lanes in BOTH the gate and the gated
            # logits so they pollute neither the numerator nor the denominator.
            tile = pl.program_id(1) * n_p + p
            lane = jax.lax.broadcasted_iota(jnp.int32, (1, tp), 1)
            valid = (tile * tp + lane) < P                                # (1, tp)
            wgt = jnp.where(valid, wgt, 0.0)
            contrib = jnp.where(valid, contrib, 0.0)

        # Lane-resident accumulation; cross-lane reduce only at finalize.
        num_acc[...] += contrib
        den_acc[...] += wgt

        @pl.when(p == pl.num_programs(2) - 1)
        def _():
            num_ref[0, 0, :] = jnp.sum(num_acc[...], axis=-1)
            den_ref[0, 0, :] = jnp.sum(den_acc[...], axis=-1)

    grid_spec = pltpu.PrefetchScalarGridSpec(
        num_scalar_prefetch=0,
        grid=(N, NS, n_p),
        in_specs=[
            # NOTE: if a trace shows DMA bubbles at step boundaries, add
            # pipeline_mode=pl.Buffered(3) to this x BlockSpec only.
            pl.BlockSpec((pl.Squeezed(), C, tp), x_index_map),            # x
            pl.BlockSpec((Co + Cm, C), lambda n, s, p: (0, 0)),           # stacked W (bf16)
            pl.BlockSpec((Co + Cm, 1), lambda n, s, p: (0, 0)),           # stacked b (f32)
            pl.BlockSpec((Co, Cm), lambda n, s, p: (0, 0)),               # wg conv2 W (f32)
            pl.BlockSpec((Co, 1), lambda n, s, p: (0, 0)),                # wg conv2 b (f32)
        ],
        out_specs=(
            pl.BlockSpec((1, 1, Co), lambda n, s, p: (n, s, 0)),          # partial num
            pl.BlockSpec((1, 1, Co), lambda n, s, p: (n, s, 0)),          # partial den
        ),
        scratch_shapes=[
            pltpu.VMEM((Co, tp), jnp.float32),   # lane-resident numerator acc
            pltpu.VMEM((Co, tp), jnp.float32),   # lane-resident denominator acc
        ],
    )

    num_part, den_part = pl.pallas_call(
        kernel,
        out_shape=(jax.ShapeDtypeStruct((N, NS, Co), jnp.float32),
                   jax.ShapeDtypeStruct((N, NS, Co), jnp.float32)),
        grid_spec=grid_spec,
        compiler_params=pltpu.CompilerParams(
            dimension_semantics=("parallel", "parallel", "arbitrary"),
            vmem_limit_bytes=int(vmem_limit)),
    )(x_ncp, w_stack, b_stack, w2f, b2f)

    # Trivial host-side combine across the spatial split (N x NS x Co values).
    num = jnp.sum(num_part, axis=1)
    den = jnp.sum(den_part, axis=1)
    return num / (den + 1e-6)


def _reference(x_nchw, bn_scale, bn_shift, wc, bc, w1, b1, w2, b2):
    """Pure-JAX f32 reference mirroring the PyTorch forward (BN inference form)."""
    N, C, H, W = x_nchw.shape
    x = x_nchw.astype(jnp.float32).reshape(N, C, H * W)
    l = jnp.einsum('oc,ncp->nop', wc, x) + bc[None, :, :]
    xbn = x * bn_scale[None, :, :] + bn_shift[None, :, :]
    h = jnp.maximum(jnp.einsum('mc,ncp->nmp', w1, xbn) + b1[None, :, :], 0.0)
    w = jax.nn.sigmoid(jnp.einsum('om,nmp->nop', w2, h) + b2[None, :, :])
    num = jnp.sum(w * l, axis=-1)
    den = jnp.sum(w, axis=-1) + 1e-6
    return num / den


if __name__ == "__main__":
    C, Co, reduction = 8, 6, 4
    Cm = C // reduction

    key = jax.random.PRNGKey(0)
    ks = jax.random.split(key, 11)

    # BatchNorm2d (inference form) folded to per-channel scale/shift, (C, 1).
    gamma = 1.0 + 0.1 * jax.random.normal(ks[0], (C,), dtype=jnp.float32)
    beta = 0.1 * jax.random.normal(ks[1], (C,), dtype=jnp.float32)
    running_mean = 0.05 * jax.random.normal(ks[2], (C,), dtype=jnp.float32)
    running_var = jnp.abs(1.0 + 0.1 * jax.random.normal(ks[3], (C,), dtype=jnp.float32))
    inv_std = 1.0 / jnp.sqrt(running_var + 1e-5)
    bn_scale = (gamma * inv_std).reshape(C, 1)
    bn_shift = (beta - gamma * running_mean * inv_std).reshape(C, 1)

    # classifier: Conv2d(C, Co, k=1); weight_generator convs 1 & 2.
    wc = 0.2 * jax.random.normal(ks[4], (Co, C), dtype=jnp.float32)
    bc = 0.1 * jax.random.normal(ks[5], (Co, 1), dtype=jnp.float32)
    w1 = 0.2 * jax.random.normal(ks[6], (Cm, C), dtype=jnp.float32)
    b1 = 0.1 * jax.random.normal(ks[7], (Cm, 1), dtype=jnp.float32)
    w2 = 0.2 * jax.random.normal(ks[8], (Co, Cm), dtype=jnp.float32)
    b2 = 0.1 * jax.random.normal(ks[9], (Co, 1), dtype=jnp.float32)
    params = (bn_scale, bn_shift, wc, bc, w1, b1, w2, b2)

    cases = [
        # (N, H, W, max_tp)  max_tp=None -> VMEM-budgeted (one full-P tile here)
        (2, 16, 16, None),   # even batch, P % 128 == 0, single big tile per image
        (1, 5, 100, 128),    # N=1 -> spatial megacore split + ragged tail masking
        (1, 10, 30, 128),    # odd tile count -> clamped, fully-masked overrun tile
    ]
    for idx, (N, H, W, max_tp) in enumerate(cases):
        kx = jax.random.fold_in(ks[10], idx)
        x = jax.random.normal(kx, (N, C, H, W), dtype=jnp.float32)

        out = mil_custom_pooling(x, *params, max_tp=max_tp)
        out = jax.block_until_ready(out)

        ref = _reference(x, *params)
        assert out.shape == (N, Co), (out.shape, (N, Co))
        # bf16 x/weight products in the kernel vs f32 reference -> relaxed tol.
        assert jnp.allclose(out, ref, atol=2e-2, rtol=2e-2), (idx, out, ref)

    print("KERNEL_OK")
</pallas_src>

<mosaic_0001>
module attributes {stable_mosaic.version = 11 : i64} {
  func.func @kernel(%arg0: i32, %arg1: i32, %arg2: i32, %arg3: memref<1x8x256xf32, #tpu.memory_space<vmem>>, %arg4: memref<8x8xbf16, #tpu.memory_space<vmem>>, %arg5: memref<8x1xf32, #tpu.memory_space<vmem>>, %arg6: memref<6x2xf32, #tpu.memory_space<vmem>>, %arg7: memref<6x1xf32, #tpu.memory_space<vmem>>, %arg8: memref<1x1x6xf32, #tpu.memory_space<vmem>>, %arg9: memref<1x1x6xf32, #tpu.memory_space<vmem>>, %arg10: memref<6x256xf32, #tpu.memory_space<vmem>>, %arg11: memref<6x256xf32, #tpu.memory_space<vmem>>) attributes {dimension_semantics = [#tpu.dimension_semantics<parallel>, #tpu.dimension_semantics<parallel>, #tpu.dimension_semantics<arbitrary>], iteration_bounds = array<i64: 2, 1, 1>, scalar_prefetch = 0 : i64, scratch_operands = 2 : i64, tpu.core_type = #tpu.core_type<tc>, window_params = [{transform_indices = @transform_0, window_bounds = array<i64: 1, 8, 256>}, {pipeline_mode = #tpu.pipeline_mode<synchronous>, transform_indices = @transform_1, window_bounds = array<i64: 8, 8>}, {pipeline_mode = #tpu.pipeline_mode<synchronous>, transform_indices = @transform_2, window_bounds = array<i64: 8, 1>}, {pipeline_mode = #tpu.pipeline_mode<synchronous>, transform_indices = @transform_3, window_bounds = array<i64: 6, 2>}, {pipeline_mode = #tpu.pipeline_mode<synchronous>, transform_indices = @transform_4, window_bounds = array<i64: 6, 1>}, {transform_indices = @transform_5, window_bounds = array<i64: 1, 1, 6>}, {transform_indices = @transform_6, window_bounds = array<i64: 1, 1, 6>}]} {
    %c0_i32 = arith.constant 0 : i32
    %0 = arith.cmpi eq, %arg2, %c0_i32 : i32
    %1 = arith.extui %0 : i1 to i32
    %c0_i32_0 = arith.constant 0 : i32
    %2 = arith.cmpi ne, %1, %c0_i32_0 : i32
    scf.if %2 {
      %cst_24 = arith.constant 0.000000e+00 : f32
      %44 = vector.broadcast %cst_24 : f32 to vector<6x256xf32>
      %c0_25 = arith.constant 0 : index
      %c0_26 = arith.constant 0 : index
      %45 = vector.load %arg10[%c0_25, %c0_26] : memref<6x256xf32, #tpu.memory_space<vmem>>, vector<6x256xf32>
      tpu.vector_store %arg10[%c0_25, %c0_26], %44 {strides = array<i32>} : memref<6x256xf32, #tpu.memory_space<vmem>>, vector<6x256xf32>,
      %cst_27 = arith.constant 0.000000e+00 : f32
      %46 = vector.broadcast %cst_27 : f32 to vector<6x256xf32>
      %c0_28 = arith.constant 0 : index
      %c0_29 = arith.constant 0 : index
      %47 = vector.load %arg11[%c0_28, %c0_29] : memref<6x256xf32, #tpu.memory_space<vmem>>, vector<6x256xf32>
      tpu.vector_store %arg11[%c0_28, %c0_29], %46 {strides = array<i32>} : memref<6x256xf32, #tpu.memory_space<vmem>>, vector<6x256xf32>,
    } else {
    }
    %c0 = arith.constant 0 : index
    %c0_1 = arith.constant 0 : index
    %c0_2 = arith.constant 0 : index
    %3 = vector.load %arg3[%c0, %c0_1, %c0_2] : memref<1x8x256xf32, #tpu.memory_space<vmem>>, vector<1x8x256xf32>
    %4 = vector.shape_cast %3 : vector<1x8x256xf32> to vector<8x256xf32>
    %5 = arith.truncf %4 : vector<8x256xf32> to vector<8x256xbf16>
    %c0_3 = arith.constant 0 : index
    %c0_4 = arith.constant 0 : index
    %6 = vector.load %arg4[%c0_3, %c0_4] : memref<8x8xbf16, #tpu.memory_space<vmem>>, vector<8x8xbf16>
    %cst = arith.constant dense<0.000000e+00> : vector<8x256xf32>
    %7 = tpu.matmul %6, %5, %cst {dimension_numbers = #tpu.dot_dimension_numbers<[1], [0], [0], [1], [0, 0, 1, 1], [], []>} : vector<8x8xbf16>, vector<8x256xbf16>, vector<8x256xf32> -> vector<8x256xf32>
    %c0_5 = arith.constant 0 : index
    %c0_6 = arith.constant 0 : index
    %8 = vector.load %arg5[%c0_5, %c0_6] : memref<8x1xf32, #tpu.memory_space<vmem>>, vector<8x1xf32>
    %9 = vector.broadcast %8 : vector<8x1xf32> to vector<8x256xf32>
    %10 = arith.addf %7, %9 : vector<8x256xf32>
    %11 = vector.extract_strided_slice %10 {offsets = [0, 0], sizes = [6, 256], strides = [1, 1]} : vector<8x256xf32> to vector<6x256xf32>
    %12 = vector.extract_strided_slice %10 {offsets = [6, 0], sizes = [2, 256], strides = [1, 1]} : vector<8x256xf32> to vector<2x256xf32>
    %cst_7 = arith.constant 0.000000e+00 : f32
    %13 = vector.broadcast %cst_7 : f32 to vector<2x256xf32>
    %14 = arith.maximumf %12, %13 : vector<2x256xf32>
    %c0_8 = arith.constant 0 : index
    %c0_9 = arith.constant 0 : index
    %15 = vector.load %arg7[%c0_8, %c0_9] : memref<6x1xf32, #tpu.memory_space<vmem>>, vector<6x1xf32>
    %c0_10 = arith.constant 0 : index
    %c0_11 = arith.constant 0 : index
    %16 = vector.load %arg6[%c0_10, %c0_11] : memref<6x2xf32, #tpu.memory_space<vmem>>, vector<6x1xf32>
    %17 = vector.extract_strided_slice %14 {offsets = [0, 0], sizes = [1, 256], strides = [1, 1]} : vector<2x256xf32> to vector<1x256xf32>
    %18 = vector.broadcast %16 : vector<6x1xf32> to vector<6x256xf32>
    %19 = vector.broadcast %17 : vector<1x256xf32> to vector<6x256xf32>
    %20 = arith.mulf %18, %19 : vector<6x256xf32>
    %21 = vector.broadcast %15 : vector<6x1xf32> to vector<6x256xf32>
    %22 = arith.addf %21, %20 : vector<6x256xf32>
    %c0_12 = arith.constant 0 : index
    %c1 = arith.constant 1 : index
    %23 = vector.load %arg6[%c0_12, %c1] : memref<6x2xf32, #tpu.memory_space<vmem>>, vector<6x1xf32>
    %24 = vector.extract_strided_slice %14 {offsets = [1, 0], sizes = [1, 256], strides = [1, 1]} : vector<2x256xf32> to vector<1x256xf32>
    %25 = vector.broadcast %23 : vector<6x1xf32> to vector<6x256xf32>
    %26 = vector.broadcast %24 : vector<1x256xf32> to vector<6x256xf32>
    %27 = arith.mulf %25, %26 : vector<6x256xf32>
    %28 = arith.addf %22, %27 : vector<6x256xf32>
    %29 = arith.negf %28 : vector<6x256xf32>
    %30 = math.exp %29 : vector<6x256xf32>
    %cst_13 = arith.constant 1.000000e+00 : f32
    %31 = vector.broadcast %cst_13 : f32 to vector<6x256xf32>
    %32 = arith.addf %31, %30 : vector<6x256xf32>
    %33 = arith.divf %31, %32 : vector<6x256xf32>
    %34 = arith.mulf %33, %11 : vector<6x256xf32>
    %c0_14 = arith.constant 0 : index
    %c0_15 = arith.constant 0 : index
    %35 = vector.load %arg10[%c0_14, %c0_15] : memref<6x256xf32, #tpu.memory_space<vmem>>, vector<6x256xf32>
    %36 = arith.addf %35, %34 : vector<6x256xf32>
    %c0_16 = arith.constant 0 : index
    %c0_17 = arith.constant 0 : index
    %37 = vector.load %arg10[%c0_16, %c0_17] : memref<6x256xf32, #tpu.memory_space<vmem>>, vector<6x256xf32>
    tpu.vector_store %arg10[%c0_16, %c0_17], %36 {strides = array<i32>} : memref<6x256xf32, #tpu.memory_space<vmem>>, vector<6x256xf32>,
    %c0_18 = arith.constant 0 : index
    %c0_19 = arith.constant 0 : index
    %38 = vector.load %arg11[%c0_18, %c0_19] : memref<6x256xf32, #tpu.memory_space<vmem>>, vector<6x256xf32>
    %39 = arith.addf %38, %33 : vector<6x256xf32>
    %c0_20 = arith.constant 0 : index
    %c0_21 = arith.constant 0 : index
    %40 = vector.load %arg11[%c0_20, %c0_21] : memref<6x256xf32, #tpu.memory_space<vmem>>, vector<6x256xf32>
    tpu.vector_store %arg11[%c0_20, %c0_21], %39 {strides = array<i32>} : memref<6x256xf32, #tpu.memory_space<vmem>>, vector<6x256xf32>,
    %c0_i32_22 = arith.constant 0 : i32
    %41 = arith.cmpi eq, %arg2, %c0_i32_22 : i32
    %42 = arith.extui %41 : i1 to i32
    %c0_i32_23 = arith.constant 0 : i32
    %43 = arith.cmpi ne, %42, %c0_i32_23 : i32
    scf.if %43 {
      %c0_24 = arith.constant 0 : index
      %c0_25 = arith.constant 0 : index
      %44 = vector.load %arg10[%c0_24, %c0_25] : memref<6x256xf32, #tpu.memory_space<vmem>>, vector<6x256xf32>
      %cst_26 = arith.constant dense<0.000000e+00> : vector<6xf32>
      %45 = vector.multi_reduction <add>, %44, %cst_26 [1] : vector<6x256xf32> to vector<6xf32>
      %c0_27 = arith.constant 0 : index
      %c0_28 = arith.constant 0 : index
      %c0_29 = arith.constant 0 : index
      %46 = vector.load %arg8[%c0_27, %c0_28, %c0_29] : memref<1x1x6xf32, #tpu.memory_space<vmem>>, vector<1x1x6xf32>
      %47 = vector.shape_cast %46 : vector<1x1x6xf32> to vector<6xf32>
      %48 = vector.shape_cast %45 : vector<6xf32> to vector<1x1x6xf32>
      tpu.vector_store %arg8[%c0_27, %c0_28, %c0_29], %48 {strides = array<i32>} : memref<1x1x6xf32, #tpu.memory_space<vmem>>, vector<1x1x6xf32>,
      %c0_30 = arith.constant 0 : index
      %c0_31 = arith.constant 0 : index
      %49 = vector.load %arg11[%c0_30, %c0_31] : memref<6x256xf32, #tpu.memory_space<vmem>>, vector<6x256xf32>
      %cst_32 = arith.constant dense<0.000000e+00> : vector<6xf32>
      %50 = vector.multi_reduction <add>, %49, %cst_32 [1] : vector<6x256xf32> to vector<6xf32>
      %c0_33 = arith.constant 0 : index
      %c0_34 = arith.constant 0 : index
      %c0_35 = arith.constant 0 : index
      %51 = vector.load %arg9[%c0_33, %c0_34, %c0_35] : memref<1x1x6xf32, #tpu.memory_space<vmem>>, vector<1x1x6xf32>
      %52 = vector.shape_cast %51 : vector<1x1x6xf32> to vector<6xf32>
      %53 = vector.shape_cast %50 : vector<6xf32> to vector<1x1x6xf32>
      tpu.vector_store %arg9[%c0_33, %c0_34, %c0_35], %53 {strides = array<i32>} : memref<1x1x6xf32, #tpu.memory_space<vmem>>, vector<1x1x6xf32>,
    } else {
    }
    return
  }
  func.func @transform_0(%arg0: i32, %arg1: i32, %arg2: i32) -> (i32, i32, i32) {
    %c1_i32 = arith.constant 1 : i32
    %0 = arith.muli %arg1, %c1_i32 : i32
    %1 = arith.addi %0, %arg2 : i32
    %c0_i32 = arith.constant 0 : i32
    %c0_i32_0 = arith.constant 0 : i32
    return %arg0, %c0_i32, %1 : i32, i32, i32
  }
  func.func @transform_1(%arg0: i32, %arg1: i32, %arg2: i32) -> (i32, i32) {
    %c0_i32 = arith.constant 0 : i32
    %c0_i32_0 = arith.constant 0 : i32
    %c0_i32_1 = arith.constant 0 : i32
    return %c0_i32, %c0_i32_0 : i32, i32
  }
  func.func @transform_2(%arg0: i32, %arg1: i32, %arg2: i32) -> (i32, i32) {
    %c0_i32 = arith.constant 0 : i32
    %c0_i32_0 = arith.constant 0 : i32
    %c0_i32_1 = arith.constant 0 : i32
    return %c0_i32, %c0_i32_0 : i32, i32
  }
  func.func @transform_3(%arg0: i32, %arg1: i32, %arg2: i32) -> (i32, i32) {
    %c0_i32 = arith.constant 0 : i32
    %c0_i32_0 = arith.constant 0 : i32
    %c0_i32_1 = arith.constant 0 : i32
    return %c0_i32, %c0_i32_0 : i32, i32
  }
  func.func @transform_4(%arg0: i32, %arg1: i32, %arg2: i32) -> (i32, i32) {
    %c0_i32 = arith.constant 0 : i32
    %c0_i32_0 = arith.constant 0 : i32
    %c0_i32_1 = arith.constant 0 : i32
    return %c0_i32, %c0_i32_0 : i32, i32
  }
  func.func @transform_5(%arg0: i32, %arg1: i32, %arg2: i32) -> (i32, i32, i32) {
    %c0_i32 = arith.constant 0 : i32
    %c0_i32_0 = arith.constant 0 : i32
    return %arg0, %arg1, %c0_i32 : i32, i32, i32
  }
  func.func @transform_6(%arg0: i32, %arg1: i32, %arg2: i32) -> (i32, i32, i32) {
    %c0_i32 = arith.constant 0 : i32
    %c0_i32_0 = arith.constant 0 : i32
    return %arg0, %arg1, %c0_i32 : i32, i32, i32
  }
}

</mosaic_0001>

<llo_original>
// kernel: tpu_custom_call.1
$region0: #{tpu_custom_call.1}
  #allocation0 [shape = 'u32[]', space=smem, size = 0x4, offset = 0x4, fixed_abs, tag = 'smem constant byte address 0x4 - core index']
  #allocation1 [shape = 'u32[144,128]{1,0:T(1,128)}', space=vmem, size = 0x12000, scoped, tag = 'internal scratch']
  #allocation2 [shape = 'f32[6,256]{1,0:T(8,128)}', space=vmem, size = 0x2000, scoped, tag = 'scratch operand']
  #allocation3 [shape = 'f32[6,256]{1,0:T(8,128)}', space=vmem, size = 0x2000, scoped, tag = 'scratch operand']
  %s0 = inlined_call_operand.hbm [shape: f32[2,8,256], index: 0, kind: input, shape index: {}]
  %s1 = inlined_call_operand.vmem [shape: bf16[8,8], index: 1, kind: input, shape index: {}]
  %s2 = inlined_call_operand.vmem [shape: f32[8,1], index: 2, kind: input, shape index: {}]
  %s3 = inlined_call_operand.vmem [shape: f32[6,2], index: 3, kind: input, shape index: {}]
  %s4 = inlined_call_operand.vmem [shape: f32[6,1], index: 4, kind: input, shape index: {}]
  %s5 = inlined_call_operand.hbm [shape: f32[2,1,6], index: 5, kind: output, shape index: {0}]
  %s6 = inlined_call_operand.hbm [shape: f32[2,1,6], index: 6, kind: output, shape index: {1}]
  %7 = xla_tuple %s5, %s6
  %s8 = sld [smem:[#allocation0]]
  $region73: #{tpu_custom_call.1} parent=0
    _
  %s10 = ssub.s32 1, %s8
  %s11 = scalar_select 0, %s10, %s8
  $region1: #{tpu_custom_call.1} parent=0
    #allocation4 [shape = 'u8[16384]{0}', space=vmem, size = 0x4000, scoped, tag = 'input window, operand 0']
    #allocation5 [shape = 's32[2]{0}', space=sflag, size = 0x8, scoped, tag = 'scoped memory for tpu_custom_call.1']
    #allocation6 [shape = 's32[2]{0}', space=sflag, size = 0x8, scoped, tag = 'scoped memory for tpu_custom_call.1']
    #allocation7 [shape = 'u8[1024]{0}', space=vmem, size = 0x400, scoped, tag = 'output window, operand 0']
    #allocation8 [shape = 'u8[1024]{0}', space=vmem, size = 0x400, scoped, tag = 'output window, operand 1']
    #allocation9 [shape = 's32[2]{0}', space=sflag, size = 0x8, scoped, tag = 'scoped memory for tpu_custom_call.1']
    %12 = vsyncpa [#allocation5], 0
    %s13 = scalar_lea.sflag [#allocation5], 1
    %14 = vsyncpa %s13, 0
    %15 = vsyncpa [#allocation6], 0
    %s16 = scalar_lea.sflag [#allocation6], 1
    %17 = vsyncpa %s16, 0
    %18 = vsyncpa [#allocation9], 0
    %s19 = scalar_lea.sflag [#allocation9], 1
    %20 = vsyncpa %s19, 0
    loop: start=0, step=1, limit=4
    $region2: #{tpu_custom_call.1} parent=1 // loop_pre_header
      _
    $region3: #{tpu_custom_call.1} parent=1 // loop_header
      %s22 = sphi 0, %s26
      %p23 = scmp.ge.s32.totalorder %s22, 4
      %s29 = sphi 0, %s48
      %s30 = sphi 0, %s44
      %s31 = sphi 0, %s40
      %s32 = sphi 0, %s29
      %s33 = sphi 0, %s30
      %s34 = sphi 0, %s31
      %s35 = sphi 0, %s32
      %s36 = sphi 0, %s33
      %s37 = sphi 0, %s34
      %s55 = sphi 0, %s57
      %s58 = sphi 0, %s55
      %s59 = sphi 0, %s58
      %s75 = sphi 0, %s59
      %s79 = sphi 0, %s79
      %s81 = sphi 0, %s79
      %s82 = sphi 0, %s81
      %s96 = sphi 0, %s82
      %s100 = sphi 0, %s100
      %s102 = sphi 0, %s100
      %s103 = sphi 0, %s102
      %s117 = sphi 0, %s103
      %s121 = sphi 0, %s121
      %s123 = sphi 0, %s121
      %s124 = sphi 0, %s123
      %s138 = sphi 0, %s124
      %s142 = sphi 0, %s142
      %s144 = sphi 0, %s142
      %s145 = sphi 0, %s144
      %s159 = sphi 0, %s145
      %s167 = sphi 0, %s169
      %s170 = sphi 0, %s167
      %s171 = sphi 0, %s170
      %s187 = sphi 0, %s171
      %s195 = sphi 0, %s197
      %s198 = sphi 0, %s195
      %s199 = sphi 0, %s198
      %s215 = sphi 0, %s199
    $region4: #{tpu_custom_call.1} parent=1 // loop_header_branch
      %25 = sbr.rel (%p23) target = $region8
    $region5: #{tpu_custom_call.1} parent=1 // loop_body
      %s27 = ssub.s32 %s22, 1
      %s28 = ssub.s32 %s22, 2
      %s38 = sadd.s32 1, %s31
      %p39 = scmp.ge.s32.totalorder %s38, 1
      %s40 = scalar_select %p39, 0, %s38
      %s41 = sadd.s32 1, %s30
      %s42 = scalar_select %p39, %s41, %s30
      %p43 = scmp.ge.s32.totalorder %s42, 1
      %s44 = scalar_select %p43, 0, %s42
      %s45 = sadd.s32 1, %s29
      %s46 = scalar_select %p43, %s45, %s29
      %p47 = scmp.ge.s32.totalorder %s46, 2
      %s48 = scalar_select %p47, 0, %s46
      %s49 = sadd.s32 %s30, %s31
      %s50 = sadd.s32 %s44, %s40
      %s51 = ssub.s32 %s29, %s48
      %s52 = ssub.s32 %s49, %s50
      %s53 = sor.u32 %s51, %s52
      %p54 = scmp.eq.s32.totalorder %s53, 0
      %s56 = sadd.s32 %s55, 1
      %s57 = scalar_select %p54, %s55, %s56
      %p60 = pneg %p54
      %p61 = scmp.eq.s32.totalorder %s22, 1
      %p62 = por %p60, %p61
      %p63 = scmp.ne.s32.totalorder %s55, %s58
      %p64 = scmp.eq.s32.totalorder %s22, 0
      %p65 = por %p63, %p64
      %p66 = scmp.ne.s32.totalorder %s55, %s58
      %p67 = scmp.eq.s32.totalorder %s27, 1
      %p68 = por %p66, %p67
      %p69 = scmp.ne.s32.totalorder %s58, %s59
      %p70 = scmp.eq.s32.totalorder %s27, 0
      %p71 = por %p69, %p70
      %p72 = scmp.ne.s32.totalorder %s58, %s59
      %p73 = scmp.eq.s32.totalorder %s28, 1
      %p74 = por %p72, %p73
      %p76 = scmp.ne.s32.totalorder %s59, %s75
      %p77 = scmp.eq.s32.totalorder %s28, 0
      %p78 = por %p76, %p77
      %s80 = sadd.s32 %s79, 1
      %p83 = scmp.eq.s32.totalorder %s22, 1
      %p84 = scmp.ne.s32.totalorder %s79, %s81
      %p85 = scmp.eq.s32.totalorder %s22, 0
      %p86 = por %p84, %p85
      %p87 = scmp.ne.s32.totalorder %s79, %s81
      %p88 = scmp.eq.s32.totalorder %s27, 1
      %p89 = por %p87, %p88
      %p90 = scmp.ne.s32.totalorder %s81, %s82
      %p91 = scmp.eq.s32.totalorder %s27, 0
      %p92 = por %p90, %p91
      %p93 = scmp.ne.s32.totalorder %s81, %s82
      %p94 = scmp.eq.s32.totalorder %s28, 1
      %p95 = por %p93, %p94
      %p97 = scmp.ne.s32.totalorder %s82, %s96
      %p98 = scmp.eq.s32.totalorder %s28, 0
      %p99 = por %p97, %p98
      %s101 = sadd.s32 %s100, 1
      %p104 = scmp.eq.s32.totalorder %s22, 1
      %p105 = scmp.ne.s32.totalorder %s100, %s102
      %p106 = scmp.eq.s32.totalorder %s22, 0
      %p107 = por %p105, %p106
      %p108 = scmp.ne.s32.totalorder %s100, %s102
      %p109 = scmp.eq.s32.totalorder %s27, 1
      %p110 = por %p108, %p109
      %p111 = scmp.ne.s32.totalorder %s102, %s103
      %p112 = scmp.eq.s32.totalorder %s27, 0
      %p113 = por %p111, %p112
      %p114 = scmp.ne.s32.totalorder %s102, %s103
      %p115 = scmp.eq.s32.totalorder %s28, 1
      %p116 = por %p114, %p115
      %p118 = scmp.ne.s32.totalorder %s103, %s117
      %p119 = scmp.eq.s32.totalorder %s28, 0
      %p120 = por %p118, %p119
      %s122 = sadd.s32 %s121, 1
      %p125 = scmp.eq.s32.totalorder %s22, 1
      %p126 = scmp.ne.s32.totalorder %s121, %s123
      %p127 = scmp.eq.s32.totalorder %s22, 0
      %p128 = por %p126, %p127
      %p129 = scmp.ne.s32.totalorder %s121, %s123
      %p130 = scmp.eq.s32.totalorder %s27, 1
      %p131 = por %p129, %p130
      %p132 = scmp.ne.s32.totalorder %s123, %s124
      %p133 = scmp.eq.s32.totalorder %s27, 0
      %p134 = por %p132, %p133
      %p135 = scmp.ne.s32.totalorder %s123, %s124
      %p136 = scmp.eq.s32.totalorder %s28, 1
      %p137 = por %p135, %p136
      %p139 = scmp.ne.s32.totalorder %s124, %s138
      %p140 = scmp.eq.s32.totalorder %s28, 0
      %p141 = por %p139, %p140
      %s143 = sadd.s32 %s142, 1
      %p146 = scmp.eq.s32.totalorder %s22, 1
      %p147 = scmp.ne.s32.totalorder %s142, %s144
      %p148 = scmp.eq.s32.totalorder %s22, 0
      %p149 = por %p147, %p148
      %p150 = scmp.ne.s32.totalorder %s142, %s144
      %p151 = scmp.eq.s32.totalorder %s27, 1
      %p152 = por %p150, %p151
      %p153 = scmp.ne.s32.totalorder %s144, %s145
      %p154 = scmp.eq.s32.totalorder %s27, 0
      %p155 = por %p153, %p154
      %p156 = scmp.ne.s32.totalorder %s144, %s145
      %p157 = scmp.eq.s32.totalorder %s28, 1
      %p158 = por %p156, %p157
      %p160 = scmp.ne.s32.totalorder %s145, %s159
      %p161 = scmp.eq.s32.totalorder %s28, 0
      %p162 = por %p160, %p161
      %s163 = ssub.s32 %s29, %s48
      %s164 = ssub.s32 %s30, %s44
      %s165 = sor.u32 %s163, %s164
      %p166 = scmp.eq.s32.totalorder %s165, 0
      %s168 = sadd.s32 %s167, 1
      %s169 = scalar_select %p166, %s167, %s168
      %p172 = pneg %p166
      %p173 = scmp.eq.s32.totalorder %s22, 1
      %p174 = por %p172, %p173
      %p175 = scmp.ne.s32.totalorder %s167, %s170
      %p176 = scmp.eq.s32.totalorder %s22, 0
      %p177 = por %p175, %p176
      %p178 = scmp.ne.s32.totalorder %s167, %s170
      %p179 = scmp.eq.s32.totalorder %s27, 1
      %p180 = por %p178, %p179
      %p181 = scmp.ne.s32.totalorder %s170, %s171
      %p182 = scmp.eq.s32.totalorder %s27, 0
      %p183 = por %p181, %p182
      %p184 = scmp.ne.s32.totalorder %s170, %s171
      %p185 = scmp.eq.s32.totalorder %s28, 1
      %p186 = por %p184, %p185
      %p188 = scmp.ne.s32.totalorder %s171, %s187
      %p189 = scmp.eq.s32.totalorder %s28, 0
      %p190 = por %p188, %p189
      %s191 = ssub.s32 %s29, %s48
      %s192 = ssub.s32 %s30, %s44
      %s193 = sor.u32 %s191, %s192
      %p194 = scmp.eq.s32.totalorder %s193, 0
      %s196 = sadd.s32 %s195, 1
      %s197 = scalar_select %p194, %s195, %s196
      %p200 = pneg %p194
      %p201 = scmp.eq.s32.totalorder %s22, 1
      %p202 = por %p200, %p201
      %p203 = scmp.ne.s32.totalorder %s195, %s198
      %p204 = scmp.eq.s32.totalorder %s22, 0
      %p205 = por %p203, %p204
      %p206 = scmp.ne.s32.totalorder %s195, %s198
      %p207 = scmp.eq.s32.totalorder %s27, 1
      %p208 = por %p206, %p207
      %p209 = scmp.ne.s32.totalorder %s198, %s199
      %p210 = scmp.eq.s32.totalorder %s27, 0
      %p211 = por %p209, %p210
      %p212 = scmp.ne.s32.totalorder %s198, %s199
      %p213 = scmp.eq.s32.totalorder %s28, 1
      %p214 = por %p212, %p213
      %p216 = scmp.ne.s32.totalorder %s199, %s215
      %p217 = scmp.eq.s32.totalorder %s28, 0
      %p218 = por %p216, %p217
      %p219 = scmp.le.s32.totalorder 1, %s22
      %p220 = scmp.lt.s32.totalorder %s22, 3
      %p221 = pnand %p219, %p220
      %p222 = pneg %p221
      // Predicated region
      $region9: #{tpu_custom_call.1} parent=5 // pred_check
        _
      $region10: #{tpu_custom_call.1} parent=5 // pred_check_branch
        %224 = sbr.rel (%p221) target = $region12
      $region11: #{tpu_custom_call.1} parent=5 // pred_region
        %s225 = ssub.s32 %s22, 1
        // Predicated region
        $region13: #{tpu_custom_call.1} parent=11 // pred_check
          %p226 = pneg %p92
        $region14: #{tpu_custom_call.1} parent=11 // pred_check_branch
          %228 = sbr.rel (%p226) target = $region16
        $region15: #{tpu_custom_call.1} parent=11 // pred_region
          _
        $region16: #{tpu_custom_call.1} parent=11 // pred_fallthru
          _
        // Predicated region
        $region17: #{tpu_custom_call.1} parent=11 // pred_check
          %p229 = pneg %p113
        $region18: #{tpu_custom_call.1} parent=11 // pred_check_branch
          %231 = sbr.rel (%p229) target = $region20
        $region19: #{tpu_custom_call.1} parent=11 // pred_region
          _
        $region20: #{tpu_custom_call.1} parent=11 // pred_fallthru
          _
        // Predicated region
        $region21: #{tpu_custom_call.1} parent=11 // pred_check
          %p232 = pneg %p134
        $region22: #{tpu_custom_call.1} parent=11 // pred_check_branch
          %234 = sbr.rel (%p232) target = $region24
        $region23: #{tpu_custom_call.1} parent=11 // pred_region
          _
        $region24: #{tpu_custom_call.1} parent=11 // pred_fallthru
          _
        // Predicated region
        $region25: #{tpu_custom_call.1} parent=11 // pred_check
          %p235 = pneg %p155
        $region26: #{tpu_custom_call.1} parent=11 // pred_check_branch
          %237 = sbr.rel (%p235) target = $region28
        $region27: #{tpu_custom_call.1} parent=11 // pred_region
          _
        $region28: #{tpu_custom_call.1} parent=11 // pred_fallthru
          _
      $region12: #{tpu_custom_call.1} parent=5 // pred_fallthru
        _
      %p238 = scmp.lt.s32.totalorder %s22, 2
      // Predicated region
      $region29: #{tpu_custom_call.1} parent=5 // pred_check
        %p239 = pneg %p238
      $region30: #{tpu_custom_call.1} parent=5 // pred_check_branch
        %241 = sbr.rel (%p239) target = $region32
      $region31: #{tpu_custom_call.1} parent=5 // pred_region
        // Predicated region
        $region33: #{tpu_custom_call.1} parent=31 // pred_check
          %p242 = pneg %p65
        $region34: #{tpu_custom_call.1} parent=31 // pred_check_branch
          %244 = sbr.rel (%p242) target = $region36
        $region35: #{tpu_custom_call.1} parent=31 // pred_region
          %s245 = sand.u32 %s55, 1
          %s246 = scalar_lea.sflag [#allocation5], %s245
          %s247 = sand.u32 %s55, 1
          %s248 = smul.addr %s247, 16
          %s249 = scalar_lea.vmem [#allocation4], %s248
          %s250 = sadd.s32 %s30, %s31
          %s251 = smul.u32 2, %s250
          %s253 = ssub.s32 256, 256
          %254 = vsyncadd %s246, %s253
          %s255 = smul.addr %s29, 2
          %s256 = sadd.s32 %s251, %s255
          %s257 = smul.addr %s256, 128
          %s258 = scalar_lea.hbm %s0, %s257
          %s260 = sshll.u32 %s249, 4
          %s261 = int_to_ptr.vmem [resolvable:$true] %s260
          %263 = dma.hbm_to_vmem [thread:$0]  %s258, 256, %s261, %s246
        $region36: #{tpu_custom_call.1} parent=31 // pred_fallthru
          _
      $region32: #{tpu_custom_call.1} parent=5 // pred_fallthru
        _
      %p264 = scmp.le.s32.totalorder 1, %s22
      %p265 = scmp.lt.s32.totalorder %s22, 3
      %p266 = pnand %p264, %p265
      %p267 = pneg %p266
      // Predicated region
      $region37: #{tpu_custom_call.1} parent=5 // pred_check
        _
      $region38: #{tpu_custom_call.1} parent=5 // pred_check_branch
        %269 = sbr.rel (%p266) target = $region40
      $region39: #{tpu_custom_call.1} parent=5 // pred_region
        %s270 = ssub.s32 %s22, 1
        %s271 = sand.u32 %s58, 1
        %s272 = scalar_lea.sflag [#allocation5], %s271
        %s273 = sand.u32 %s58, 1
        %s274 = smul.addr %s273, 16
        %s275 = scalar_lea.vmem [#allocation4], %s274
        // Predicated region
        $region41: #{tpu_custom_call.1} parent=39 // pred_check
          %p276 = pneg %p71
        $region42: #{tpu_custom_call.1} parent=39 // pred_check_branch
          %278 = sbr.rel (%p276) target = $region44
        $region43: #{tpu_custom_call.1} parent=39 // pred_region
          %279 = dma.done %s272, 256
        $region44: #{tpu_custom_call.1} parent=39 // pred_fallthru
          _
        %s280 = sand.u32 %s58, 1
        %s281 = scalar_lea.sflag [#allocation5], %s280
        %s282 = sand.u32 %s58, 1
        %s283 = smul.addr %s282, 16
        %s284 = scalar_lea.vmem [#allocation4], %s283
        %p285 = pneg %p71
        %p286 = pneg %p68
        %p287 = pneg %p92
        %p288 = pneg %p89
        %p289 = pneg %p113
        %p290 = pneg %p110
        %p291 = pneg %p134
        %p292 = pneg %p131
        %p293 = pneg %p155
        %p294 = pneg %p152
        %p295 = pneg %p183
        %p296 = pneg %p180
        %s297 = sand.u32 %s170, 1
        %s298 = scalar_lea.sflag [#allocation6], %s297
        %s299 = sand.u32 %s170, 1
        %s300 = scalar_lea.vmem [#allocation7], %s299
        %p301 = pneg %p211
        %p302 = pneg %p208
        %s303 = sand.u32 %s198, 1
        %s304 = scalar_lea.sflag [#allocation9], %s303
        %s305 = sand.u32 %s198, 1
        %s306 = scalar_lea.vmem [#allocation8], %s305
        %s307 = sadd.s32 %s33, %s34
        %s308 = smul.u32 2, %s307
        %p310 = scmp.eq.s32.totalorder %s34, 0
        // Predicated region
        $region45: #{tpu_custom_call.1} parent=39 // pred_check
          %p311 = pneg %p310
        $region46: #{tpu_custom_call.1} parent=39 // pred_check_branch
          %313 = sbr.rel (%p311) target = $region48
        $region47: #{tpu_custom_call.1} parent=39 // pred_region
          %314 = vst [vmem:[#allocation2] sm:$0x3f] 0.0
          %315 = vst [vmem:[#allocation2 + $0x8] sm:$0x3f] 0.0
          %316 = vst [vmem:[#allocation3] sm:$0x3f] 0.0
          %317 = vst [vmem:[#allocation3 + $0x8] sm:$0x3f] 0.0
        $region48: #{tpu_custom_call.1} parent=39 // pred_fallthru
          _
        %v318 = vld [vmem:[%s275] sm:$0xff]
        %v319 = vld [vmem:[%s275 + $0x8] sm:$0xff]
        %v320 = vpack.c.bf16 %v318, %v318
        %v321 = vpack.c.bf16 %v319, %v319
        %v322 = vld [vmem:[%s1] sm:$0xf]
        %v323 = vld [vmem:[%s2] sm:$0xff]
        %325 = vset.pattern.permute.xlu0 0
        %326 = vperm.xlu0 %325, %v323
        %v327 = vpop.permute.xlu0 %326
        %vm329 = vcmask 64512
        %v331 = vsel %vm329, %v322, 0
        %vm333 = vcmask 1043456
        %v335 = vsel %vm333, %v320, 0
        %v338 = vsel %vm333, %v321, 0
        %340 = vmatprep.subr.bf16.mxu0 %v338
        %341 = vmatpush1.bf16.msra.mxu0 %v335
        %342 = vmatprep.subr.bf16.mxu0 0
        %343 = vmatpush1.bf16.msra.mxu0 0
        %344 = vmatprep.subr.bf16.mxu0 0
        %345 = vmatpush1.bf16.msra.mxu0 0
        %346 = vmatprep.subr.bf16.mxu0 0
        %347 = vmatpush1.bf16.msra.mxu0 0
        %348 = vmatprep.subr.bf16.mxu0 0
        %349 = vmatpush1.bf16.msra.mxu0 0
        %350 = vmatprep.subr.bf16.mxu0 0
        %351 = vmatpush1.bf16.msra.mxu0 0
        %352 = vmatprep.subr.bf16.mxu0 0
        %353 = vmatpush1.bf16.msra.mxu0 0
        %354 = vmatprep.subr.bf16.mxu0 0
        %355 = vmatpush1.bf16.msra.mxu0 0
        %356 = vmatprep.subr.bf16.mxu0 0
        %357 = vmatpush1.bf16.msra.mxu0 0
        %358 = vmatprep.subr.bf16.mxu0 0
        %359 = vmatpush1.bf16.msra.mxu0 0
        %360 = vmatprep.subr.bf16.mxu0 0
        %361 = vmatpush1.bf16.msra.mxu0 0
        %362 = vmatprep.subr.bf16.mxu0 0
        %363 = vmatpush1.bf16.msra.mxu0 0
        %364 = vmatprep.subr.bf16.mxu0 0
        %365 = vmatpush1.bf16.msra.mxu0 0
        %366 = vmatprep.subr.bf16.mxu0 0
        %367 = vmatpush1.bf16.msra.mxu0 0
        %368 = vmatprep.subr.bf16.mxu0 0
        %369 = vmatpush1.bf16.msra.mxu0 0
        %370 = vmatprep.subr.bf16.mxu0 0
        %371 = vmatpush1.bf16.msra.mxu0 0
        %372 = vmatprep.mubr.bf16.mxu0 0
        %373 = vmatmul.mubr.bf16.gmra.mrb[0].mxu0 %v331
        %v374 = vpop.f32.mrb[0].mxu0
        %v375 = vadd.f32 %v327, %v374
        %v376 = vpop.f32.mrb[0].mxu0
        %v377 = vadd.f32 %v327, %v376
        %v378 = vpop.f32.mrb[0].mxu0
        %v379 = vpop.f32.mrb[0].mxu0
        %380 = vdwg.mxu0
        %v381 = vmax.f32 %v375, 0.0
        %v382 = vmax.f32 %v377, 0.0
        %v383 = vld [vmem:[%s4] sm:$0x3f]
        %v384 = vld [vmem:[%s3] sm:$0x3f]
        %386 = vset.pattern.permute.xlu0 0
        %387 = vperm.xlu0 %386, %v384
        %v388 = vpop.permute.xlu0 %387
        %v390 = vlaneseq
        %v391 = vshrl.u32 %v390, 7
        %v392 = vsub.s32 6, %v391
        %v393 = vrot.slane %v381, %v392
        %v394 = vlaneseq
        %v395 = vshrl.u32 %v394, 7
        %v396 = vsub.s32 6, %v395
        %v397 = vrot.slane %v382, %v396
        %v398 = vmul.f32 %v388, %v393
        %v399 = vmul.f32 %v388, %v397
        %401 = vset.pattern.permute.xlu0 0
        %402 = vperm.xlu0 %401, %v383
        %v403 = vpop.permute.xlu0 %402
        %v405 = vadd.f32 %v403, %v398
        %v406 = vadd.f32 %v403, %v399
        %407 = vset.pattern.permute.xlu0 1
        %408 = vperm.xlu0 %407, %v384
        %v409 = vpop.permute.xlu0 %408
        %v411 = vlaneseq
        %v412 = vshrl.u32 %v411, 7
        %v413 = vsub.s32 7, %v412
        %v414 = vrot.slane %v381, %v413
        %v415 = vlaneseq
        %v416 = vshrl.u32 %v415, 7
        %v417 = vsub.s32 7, %v416
        %v418 = vrot.slane %v382, %v417
        %v419 = vmul.f32 %v409, %v414
        %v420 = vmul.f32 %v409, %v418
        %v421 = vadd.f32 %v405, %v419
        %v422 = vadd.f32 %v406, %v420
        %v423 = vxor.u32 %v421, 2147483648
        %v424 = vxor.u32 %v422, 2147483648
        %v425 = vmul.f32 %v423, 1.442695
        %v426 = vpow.pop %v425
        %v427 = vmul.f32 %v424, 1.442695
        %v428 = vpow.pop %v427
        %v429 = vadd.f32 %v426, 1.0
        %v430 = vadd.f32 %v428, 1.0
        %v431 = vrcp.pop %v429
        %v432 = vmul.f32 1.0, %v431
        %v433 = vrcp.pop %v430
        %v434 = vmul.f32 1.0, %v433
        %v435 = vmul.f32 %v432, %v375
        %v436 = vmul.f32 %v434, %v377
        %v437 = vld [vmem:[#allocation2] sm:$0x3f]
        %v438 = vld [vmem:[#allocation2 + $0x8] sm:$0x3f]
        %v439 = vadd.f32 %v437, %v435
        %v440 = vadd.f32 %v438, %v436
        %441 = vst [vmem:[#allocation2] sm:$0x3f] %v439
        %442 = vst [vmem:[#allocation2 + $0x8] sm:$0x3f] %v440
        %v443 = vld [vmem:[#allocation3] sm:$0x3f]
        %v444 = vld [vmem:[#allocation3 + $0x8] sm:$0x3f]
        %v445 = vadd.f32 %v443, %v432
        %v446 = vadd.f32 %v444, %v434
        %447 = vst [vmem:[#allocation3] sm:$0x3f] %v445
        %448 = vst [vmem:[#allocation3 + $0x8] sm:$0x3f] %v446
        // Predicated region
        $region49: #{tpu_custom_call.1} parent=39 // pred_check
          %p449 = pneg %p310
        $region50: #{tpu_custom_call.1} parent=39 // pred_check_branch
          %451 = sbr.rel (%p449) target = $region52
        $region51: #{tpu_custom_call.1} parent=39 // pred_region
          %v452 = vld [vmem:[#allocation2] sm:$0x3f]
          %v453 = vld [vmem:[#allocation2 + $0x8] sm:$0x3f]
          %vm454 = vcmask 1045504
          %v455 = vsel %vm454, %v452, 0.0
          %v456 = vsel %vm454, %v453, 0.0
          %v457 = vadd.f32 %v455, %v456
          %458 = vadd.xlane.f32.xlu0 %v457
          %v459 = vpop.xlane.xlu0 %458
          %v461 = vlaneseq
          %v462 = vand.u32 %v461, 127
          %v463 = vlaneseq
          %v464 = vshrl.u32 %v463, 7
          %v465 = vsub.s32 %v462, %v464
          %v466 = vrot.slane %v459, %v465
          %vm468 = vcmask 40960
          %469 = vst.msk [vmem:[%s300] sm:$0x1] %vm468, %v466
          %v470 = vld [vmem:[#allocation3] sm:$0x3f]
          %v471 = vld [vmem:[#allocation3 + $0x8] sm:$0x3f]
          %v472 = vsel %vm454, %v470, 0.0
          %v473 = vsel %vm454, %v471, 0.0
          %v474 = vadd.f32 %v472, %v473
          %475 = vadd.xlane.f32.xlu0 %v474
          %v476 = vpop.xlane.xlu0 %475
          %v478 = vlaneseq
          %v479 = vshrl.u32 %v478, 7
          %v480 = vsub.s32 %v462, %v479
          %v481 = vrot.slane %v476, %v480
          %483 = vst.msk [vmem:[%s306] sm:$0x1] %vm468, %v481
        $region52: #{tpu_custom_call.1} parent=39 // pred_fallthru
          _
        %s484 = sand.u32 %s170, 1
        %s485 = scalar_lea.sflag [#allocation6], %s484
        %s486 = sand.u32 %s170, 1
        %s487 = scalar_lea.vmem [#allocation7], %s486
        %s488 = sand.u32 %s198, 1
        %s489 = scalar_lea.sflag [#allocation9], %s488
        %s490 = sand.u32 %s198, 1
        %s491 = scalar_lea.vmem [#allocation8], %s490
        // Predicated region
        $region53: #{tpu_custom_call.1} parent=39 // pred_check
          %p492 = pneg %p180
        $region54: #{tpu_custom_call.1} parent=39 // pred_check_branch
          %494 = sbr.rel (%p492) target = $region56
        $region55: #{tpu_custom_call.1} parent=39 // pred_region
          %s496 = ssub.s32 16, 16
          %497 = vsyncadd %s485, %s496
          %s498 = sadd.s32 %s33, %s32
          %s499 = smul.addr %s498, 16
          %s500 = scalar_lea.hbm %s5, %s499
          %s502 = sshll.u32 %s487, 4
          %s503 = int_to_ptr.vmem [resolvable:$true] %s502
          %505 = dma.vmem_to_hbm [thread:$0]  %s503, 16, %s500, %s485
        $region56: #{tpu_custom_call.1} parent=39 // pred_fallthru
          _
        // Predicated region
        $region57: #{tpu_custom_call.1} parent=39 // pred_check
          %p506 = pneg %p208
        $region58: #{tpu_custom_call.1} parent=39 // pred_check_branch
          %508 = sbr.rel (%p506) target = $region60
        $region59: #{tpu_custom_call.1} parent=39 // pred_region
          %s510 = ssub.s32 16, 16
          %511 = vsyncadd %s489, %s510
          %s512 = sadd.s32 %s33, %s32
          %s513 = smul.addr %s512, 16
          %s514 = scalar_lea.hbm %s6, %s513
          %s516 = sshll.u32 %s491, 4
          %s517 = int_to_ptr.vmem [resolvable:$true] %s516
          %519 = dma.vmem_to_hbm [thread:$0]  %s517, 16, %s514, %s489
        $region60: #{tpu_custom_call.1} parent=39 // pred_fallthru
          _
      $region40: #{tpu_custom_call.1} parent=5 // pred_fallthru
        _
      %p520 = scmp.le.s32.totalorder 2, %s22
      // Predicated region
      $region61: #{tpu_custom_call.1} parent=5 // pred_check
        %p521 = pneg %p520
      $region62: #{tpu_custom_call.1} parent=5 // pred_check_branch
        %523 = sbr.rel (%p521) target = $region64
      $region63: #{tpu_custom_call.1} parent=5 // pred_region
        %s524 = ssub.s32 %s22, 2
        // Predicated region
        $region65: #{tpu_custom_call.1} parent=63 // pred_check
          %p525 = pneg %p186
        $region66: #{tpu_custom_call.1} parent=63 // pred_check_branch
          %527 = sbr.rel (%p525) target = $region68
        $region67: #{tpu_custom_call.1} parent=63 // pred_region
          %s528 = sand.u32 %s171, 1
          %s529 = scalar_lea.sflag [#allocation6], %s528
          %s530 = sand.u32 %s171, 1
          %s531 = scalar_lea.vmem [#allocation7], %s530
          %532 = dma.done %s529, 16
        $region68: #{tpu_custom_call.1} parent=63 // pred_fallthru
          _
        // Predicated region
        $region69: #{tpu_custom_call.1} parent=63 // pred_check
          %p533 = pneg %p214
        $region70: #{tpu_custom_call.1} parent=63 // pred_check_branch
          %535 = sbr.rel (%p533) target = $region72
        $region71: #{tpu_custom_call.1} parent=63 // pred_region
          %s536 = sand.u32 %s199, 1
          %s537 = scalar_lea.sflag [#allocation9], %s536
          %s538 = sand.u32 %s199, 1
          %s539 = scalar_lea.vmem [#allocation8], %s538
          %540 = dma.done %s537, 16
        $region72: #{tpu_custom_call.1} parent=63 // pred_fallthru
          _
      $region64: #{tpu_custom_call.1} parent=5 // pred_fallthru
        _
    $region6: #{tpu_custom_call.1} parent=1 // loop_footer
      %s26 = sadd.s32 1, %s22
    $region7: #{tpu_custom_call.1} parent=1 // loop_footer_branch
      %21 = sbr.rel target = $region3
    $region8: #{tpu_custom_call.1} parent=1 // loop_exit
      _
    %541 = vsyncpa [#allocation5], 1
    %s542 = scalar_lea.sflag [#allocation5], 1
    %543 = vsyncpa %s542, 1
    %544 = vsyncpa [#allocation6], 1
    %s545 = scalar_lea.sflag [#allocation6], 1
    %546 = vsyncpa %s545, 1
    %547 = vsyncpa [#allocation9], 1
    %s548 = scalar_lea.sflag [#allocation9], 1
    %549 = vsyncpa %s548, 1

</llo_original>
